<compile_context>
chip_gen: v7x
topology: tpu7x:2x2x1
jax: 0.10.0
libtpu: 0.0.40
codegen_flags: <defaults>
</compile_context>

<pallas_src>
import functools
import math

import jax
import jax.numpy as jnp
from jax.experimental import pallas as pl
from jax.experimental.pallas import tpu as pltpu

# ---------------- module config (module_cfg) ----------------
C_S = 32              # output node embedding size
C_POS_EMB = 32        # positional embedding channels
C_TIMESTEP_EMB = 32   # timestep embedding channels
MAX_LEN = 2056        # max_len for index embedding
MAX_POSITIONS = 2056  # max_positions for time embedding (module passes 2056)
N_ONEHOT = 4          # extra one-hot features (the "+ 4" in the Linear)


def _round_up(x, m):
    return (x + m - 1) // m * m


# ------------- embedding helpers (pure-JAX glue, matches utils.*) -------------
def get_index_embedding(indices, embed_size, max_len=2056):
    """indices [..., N] float32 -> [..., N, embed_size] sinusoidal embedding."""
    k = jnp.arange(embed_size // 2, dtype=jnp.float32)
    denom = max_len ** (2.0 * k / embed_size)
    ang = indices[..., None] * math.pi / denom
    return jnp.concatenate([jnp.sin(ang), jnp.cos(ang)], axis=-1)


def get_time_embedding(timesteps, embedding_dim, max_positions=2000):
    """timesteps [B] float -> [B, embedding_dim] transformer time embedding."""
    t = timesteps.astype(jnp.float32) * max_positions
    half = embedding_dim // 2
    scale = math.log(max_positions) / (half - 1)
    freqs = jnp.exp(jnp.arange(half, dtype=jnp.float32) * -scale)
    ang = t[:, None] * freqs[None, :]
    return jnp.concatenate([jnp.sin(ang), jnp.cos(ang)], axis=-1)


@functools.lru_cache(maxsize=8)
def _pos_table(num_res):
    """Cached [num_res, C_POS_EMB] positional table (depends only on length)."""
    pos = jnp.arange(num_res, dtype=jnp.float32)[None]
    tab = get_index_embedding(pos, C_POS_EMB, max_len=MAX_LEN)[0]
    return jax.block_until_ready(tab.astype(jnp.float32))


# ---------------------------- Pallas kernel ----------------------------
def node_embedder_kernel(pos_ref, oh_ref, trow_ref, mask_ref,
                         wp_ref, woh_ref, b_ref, o_ref):
    # pos_ref  : [TN, C_POS_EMB]  positional sin/cos features (per residue)
    # oh_ref   : [TN, 4]          one-hot features
    # trow_ref : [1,  C_S]        per-batch precomputed (time_emb @ Wt) row
    # mask_ref : [TN, 1]          residue mask
    # wp/woh   : [C_in_slice, C_S] column slices of Linear weight (transposed)
    # b_ref    : [1, C_S]         Linear bias
    # o_ref    : [TN, C_S]
    acc = jnp.dot(pos_ref[...], wp_ref[...], preferred_element_type=jnp.float32)
    acc = acc + jnp.dot(oh_ref[...], woh_ref[...],
                        preferred_element_type=jnp.float32)
    acc = acc + trow_ref[...]                     # broadcasts [1, C_S] over rows
    # mask after matmul: m*(x@W) == (m*x)@W ; bias added unmasked (as in torch)
    o_ref[...] = mask_ref[...] * acc + b_ref[...]


def node_embedder_forward(timesteps, mask, onehot, weight, bias, *, tile_n=8192):
    """JAX wrapper reproducing NodeEmbedder.forward.

    timesteps: [B, T] float (only column 0 is used, as in torch)
    mask:      [B, N] float
    onehot:    [B, N, 4] float
    weight:    [C_S, C_POS_EMB + 4 + C_TIMESTEP_EMB]  (torch nn.Linear layout)
    bias:      [C_S]
    returns:   [B, N, C_S] float32
    """
    b, num_res = mask.shape

    # residue tile: multiple of 8, capped at the (rounded) sequence length.
    tn = min(tile_n, _round_up(num_res, 8))
    n_tiles = pl.cdiv(num_res, tn)

    # positional table [num_res, Cp] -- cached, shared across batch
    pos_tab = _pos_table(num_res)

    # split Linear weight by the concat order: [pos_emb | onehot | time_emb]
    wp = weight[:, :C_POS_EMB].T.astype(jnp.float32)                       # [Cp, C_S]
    woh = weight[:, C_POS_EMB:C_POS_EMB + N_ONEHOT].T.astype(jnp.float32)  # [4, C_S]
    wt = weight[:, C_POS_EMB + N_ONEHOT:].T.astype(jnp.float32)            # [Ct, C_S]
    b2 = bias[None, :].astype(jnp.float32)                                 # [1, C_S]

    # pre-fold the rank-1 time term: [B, Ct] @ [Ct, C_S] -> [B, 1, C_S]
    t_emb = get_time_embedding(timesteps[:, 0], C_TIMESTEP_EMB,
                               max_positions=MAX_POSITIONS)
    t_row = (t_emb @ wt)[:, None, :].astype(jnp.float32)                   # [B, 1, C_S]

    # per-(b, n) inputs -- no padding, boundary tile is clipped by Pallas
    oh = onehot.astype(jnp.float32)                                        # [B, N, 4]
    msk = mask.astype(jnp.float32)[..., None]                              # [B, N, 1]

    # grid: residue tile OUTER, batch INNERMOST so the pos block index is
    # constant across consecutive steps and its DMA is elided across batch.
    grid = (n_tiles, b)

    out = pl.pallas_call(
        node_embedder_kernel,
        out_shape=jax.ShapeDtypeStruct((b, num_res, C_S), jnp.float32),
        grid=grid,
        in_specs=[
            # pos table: indexed by residue tile only (re-used across batch)
            pl.BlockSpec((tn, C_POS_EMB), lambda ni, bi: (ni, 0)),
            # one-hot features: per (batch, residue-tile)
            pl.BlockSpec((None, tn, N_ONEHOT), lambda ni, bi: (bi, ni, 0)),
            # precomputed time row: indexed by batch only
            pl.BlockSpec((None, 1, C_S), lambda ni, bi: (bi, 0, 0)),
            # mask: per (batch, residue-tile)
            pl.BlockSpec((None, tn, 1), lambda ni, bi: (bi, ni, 0)),
            # weights / bias: full blocks, constant index -> DMA'd once
            pl.BlockSpec((C_POS_EMB, C_S), lambda ni, bi: (0, 0)),
            pl.BlockSpec((N_ONEHOT, C_S), lambda ni, bi: (0, 0)),
            pl.BlockSpec((1, C_S), lambda ni, bi: (0, 0)),
        ],
        out_specs=pl.BlockSpec((None, tn, C_S), lambda ni, bi: (bi, ni, 0)),
        compiler_params=pltpu.CompilerParams(
            dimension_semantics=("parallel", "parallel"),
            vmem_limit_bytes=32 * 1024 * 1024,
        ),
    )(pos_tab, oh, t_row, msk, wp, woh, b2)

    return out


# ------------------------- pure-JAX reference -------------------------
def node_embedder_reference(timesteps, mask, onehot, weight, bias):
    b, num_res = mask.shape
    pos = jnp.arange(num_res, dtype=jnp.float32)[None]
    pos_emb = get_index_embedding(pos, C_POS_EMB, max_len=MAX_LEN)
    pos_emb = jnp.broadcast_to(pos_emb, (b, num_res, C_POS_EMB)) * mask[..., None]
    oh = onehot.astype(jnp.float32) * mask[..., None]
    t_emb = get_time_embedding(timesteps[:, 0], C_TIMESTEP_EMB,
                               max_positions=MAX_POSITIONS)
    t_emb = jnp.broadcast_to(t_emb[:, None, :], (b, num_res, C_TIMESTEP_EMB))
    t_emb = t_emb * mask[..., None]
    feats = jnp.concatenate([pos_emb, oh, t_emb], axis=-1).astype(jnp.float32)
    return feats @ weight.T + bias


# ------------------------------- main -------------------------------
if __name__ == "__main__":
    key = jax.random.PRNGKey(0)
    kt, km, koh, kw, kb = jax.random.split(key, 5)

    B, NUM_RES = 2, 16
    IN_DIM = C_POS_EMB + C_TIMESTEP_EMB + N_ONEHOT

    # inputs
    timesteps = jax.random.uniform(kt, (B, 1), dtype=jnp.float32)          # t in [0, 1)
    mask = (jax.random.uniform(km, (B, NUM_RES)) > 0.2).astype(jnp.float32)
    oh_idx = jax.random.randint(koh, (B, NUM_RES), 0, N_ONEHOT)
    onehot = jax.nn.one_hot(oh_idx, N_ONEHOT, dtype=jnp.float32)           # [B, N, 4]

    # deterministic nn.Linear-style parameters
    bound = 1.0 / math.sqrt(IN_DIM)
    weight = jax.random.uniform(kw, (C_S, IN_DIM), minval=-bound, maxval=bound,
                                dtype=jnp.float32)
    bias = jax.random.uniform(kb, (C_S,), minval=-bound, maxval=bound,
                              dtype=jnp.float32)

    out = node_embedder_forward(timesteps, mask, onehot, weight, bias)
    out = jax.block_until_ready(out)

    ref = node_embedder_reference(timesteps, mask, onehot, weight, bias)
    assert out.shape == (B, NUM_RES, C_S)
    assert jnp.allclose(out, ref, atol=1e-4, rtol=1e-4), "mismatch vs reference"

    print("KERNEL_OK")
</pallas_src>

<mosaic_0001>
module attributes {stable_mosaic.version = 11 : i64} {
  func.func @node_embedder_kernel(%arg0: i32, %arg1: i32, %arg2: memref<16x32xf32, #tpu.memory_space<vmem>>, %arg3: memref<1x16x4xf32, #tpu.memory_space<vmem>>, %arg4: memref<1x1x32xf32, #tpu.memory_space<vmem>>, %arg5: memref<1x16x1xf32, #tpu.memory_space<vmem>>, %arg6: memref<32x32xf32, #tpu.memory_space<vmem>>, %arg7: memref<4x32xf32, #tpu.memory_space<vmem>>, %arg8: memref<1x32xf32, #tpu.memory_space<vmem>>, %arg9: memref<1x16x32xf32, #tpu.memory_space<vmem>>) attributes {dimension_semantics = [#tpu.dimension_semantics<parallel>, #tpu.dimension_semantics<parallel>], iteration_bounds = array<i64: 1, 2>, scalar_prefetch = 0 : i64, scratch_operands = 0 : i64, tpu.core_type = #tpu.core_type<tc>, window_params = [{transform_indices = @transform_0, window_bounds = array<i64: 16, 32>}, {transform_indices = @transform_1, window_bounds = array<i64: 1, 16, 4>}, {transform_indices = @transform_2, window_bounds = array<i64: 1, 1, 32>}, {transform_indices = @transform_3, window_bounds = array<i64: 1, 16, 1>}, {pipeline_mode = #tpu.pipeline_mode<synchronous>, transform_indices = @transform_4, window_bounds = array<i64: 32, 32>}, {pipeline_mode = #tpu.pipeline_mode<synchronous>, transform_indices = @transform_5, window_bounds = array<i64: 4, 32>}, {pipeline_mode = #tpu.pipeline_mode<synchronous>, transform_indices = @transform_6, window_bounds = array<i64: 1, 32>}, {transform_indices = @transform_7, window_bounds = array<i64: 1, 16, 32>}]} {
    %c0 = arith.constant 0 : index
    %c0_0 = arith.constant 0 : index
    %0 = vector.load %arg2[%c0, %c0_0] : memref<16x32xf32, #tpu.memory_space<vmem>>, vector<16x32xf32>
    %c0_1 = arith.constant 0 : index
    %c0_2 = arith.constant 0 : index
    %1 = vector.load %arg6[%c0_1, %c0_2] : memref<32x32xf32, #tpu.memory_space<vmem>>, vector<32x32xf32>
    %cst = arith.constant dense<0.000000e+00> : vector<16x32xf32>
    %2 = tpu.matmul %0, %1, %cst {dimension_numbers = #tpu.dot_dimension_numbers<[1], [0], [0], [1], [0, 0, 1, 1], [], []>} : vector<16x32xf32>, vector<32x32xf32>, vector<16x32xf32> -> vector<16x32xf32>
    %c0_3 = arith.constant 0 : index
    %c0_4 = arith.constant 0 : index
    %c0_5 = arith.constant 0 : index
    %3 = vector.load %arg3[%c0_3, %c0_4, %c0_5] : memref<1x16x4xf32, #tpu.memory_space<vmem>>, vector<1x16x4xf32>
    %4 = vector.shape_cast %3 : vector<1x16x4xf32> to vector<16x4xf32>
    %c0_6 = arith.constant 0 : index
    %c0_7 = arith.constant 0 : index
    %5 = vector.load %arg7[%c0_6, %c0_7] : memref<4x32xf32, #tpu.memory_space<vmem>>, vector<4x32xf32>
    %cst_8 = arith.constant dense<0.000000e+00> : vector<16x32xf32>
    %6 = tpu.matmul %4, %5, %cst_8 {dimension_numbers = #tpu.dot_dimension_numbers<[1], [0], [0], [1], [0, 0, 1, 1], [], []>} : vector<16x4xf32>, vector<4x32xf32>, vector<16x32xf32> -> vector<16x32xf32>
    %7 = arith.addf %2, %6 : vector<16x32xf32>
    %c0_9 = arith.constant 0 : index
    %c0_10 = arith.constant 0 : index
    %c0_11 = arith.constant 0 : index
    %8 = vector.load %arg4[%c0_9, %c0_10, %c0_11] : memref<1x1x32xf32, #tpu.memory_space<vmem>>, vector<1x1x32xf32>
    %9 = vector.shape_cast %8 : vector<1x1x32xf32> to vector<1x32xf32>
    %10 = vector.broadcast %9 : vector<1x32xf32> to vector<16x32xf32>
    %11 = arith.addf %7, %10 : vector<16x32xf32>
    %c0_12 = arith.constant 0 : index
    %c0_13 = arith.constant 0 : index
    %c0_14 = arith.constant 0 : index
    %12 = vector.load %arg5[%c0_12, %c0_13, %c0_14] : memref<1x16x1xf32, #tpu.memory_space<vmem>>, vector<1x16x1xf32>
    %13 = vector.shape_cast %12 : vector<1x16x1xf32> to vector<16x1xf32>
    %14 = vector.broadcast %13 : vector<16x1xf32> to vector<16x32xf32>
    %15 = arith.mulf %14, %11 : vector<16x32xf32>
    %c0_15 = arith.constant 0 : index
    %c0_16 = arith.constant 0 : index
    %16 = vector.load %arg8[%c0_15, %c0_16] : memref<1x32xf32, #tpu.memory_space<vmem>>, vector<1x32xf32>
    %17 = vector.broadcast %16 : vector<1x32xf32> to vector<16x32xf32>
    %18 = arith.addf %15, %17 : vector<16x32xf32>
    %c0_17 = arith.constant 0 : index
    %c0_18 = arith.constant 0 : index
    %c0_19 = arith.constant 0 : index
    %19 = vector.load %arg9[%c0_17, %c0_18, %c0_19] : memref<1x16x32xf32, #tpu.memory_space<vmem>>, vector<1x16x32xf32>
    %20 = vector.shape_cast %19 : vector<1x16x32xf32> to vector<16x32xf32>
    %21 = vector.shape_cast %18 : vector<16x32xf32> to vector<1x16x32xf32>
    tpu.vector_store %arg9[%c0_17, %c0_18, %c0_19], %21 {strides = array<i32>} : memref<1x16x32xf32, #tpu.memory_space<vmem>>, vector<1x16x32xf32>,
    return
  }
  func.func @transform_0(%arg0: i32, %arg1: i32) -> (i32, i32) {
    %c0_i32 = arith.constant 0 : i32
    %c0_i32_0 = arith.constant 0 : i32
    return %arg0, %c0_i32 : i32, i32
  }
  func.func @transform_1(%arg0: i32, %arg1: i32) -> (i32, i32, i32) {
    %c0_i32 = arith.constant 0 : i32
    %c0_i32_0 = arith.constant 0 : i32
    return %arg1, %arg0, %c0_i32 : i32, i32, i32
  }
  func.func @transform_2(%arg0: i32, %arg1: i32) -> (i32, i32, i32) {
    %c0_i32 = arith.constant 0 : i32
    %c0_i32_0 = arith.constant 0 : i32
    %c0_i32_1 = arith.constant 0 : i32
    return %arg1, %c0_i32, %c0_i32_0 : i32, i32, i32
  }
  func.func @transform_3(%arg0: i32, %arg1: i32) -> (i32, i32, i32) {
    %c0_i32 = arith.constant 0 : i32
    %c0_i32_0 = arith.constant 0 : i32
    return %arg1, %arg0, %c0_i32 : i32, i32, i32
  }
  func.func @transform_4(%arg0: i32, %arg1: i32) -> (i32, i32) {
    %c0_i32 = arith.constant 0 : i32
    %c0_i32_0 = arith.constant 0 : i32
    %c0_i32_1 = arith.constant 0 : i32
    return %c0_i32, %c0_i32_0 : i32, i32
  }
  func.func @transform_5(%arg0: i32, %arg1: i32) -> (i32, i32) {
    %c0_i32 = arith.constant 0 : i32
    %c0_i32_0 = arith.constant 0 : i32
    %c0_i32_1 = arith.constant 0 : i32
    return %c0_i32, %c0_i32_0 : i32, i32
  }
  func.func @transform_6(%arg0: i32, %arg1: i32) -> (i32, i32) {
    %c0_i32 = arith.constant 0 : i32
    %c0_i32_0 = arith.constant 0 : i32
    %c0_i32_1 = arith.constant 0 : i32
    return %c0_i32, %c0_i32_0 : i32, i32
  }
  func.func @transform_7(%arg0: i32, %arg1: i32) -> (i32, i32, i32) {
    %c0_i32 = arith.constant 0 : i32
    %c0_i32_0 = arith.constant 0 : i32
    return %arg1, %arg0, %c0_i32 : i32, i32, i32
  }
}

</mosaic_0001>

<llo_original>
// kernel: tpu_custom_call.1
$region0: #{tpu_custom_call.1}
  #allocation0 [shape = 'u32[]', space=smem, size = 0x4, offset = 0x4, fixed_abs, tag = 'smem constant byte address 0x4 - core index']
  #allocation1 [shape = 'u32[144,128]{1,0:T(1,128)}', space=vmem, size = 0x12000, scoped, tag = 'internal scratch']
  %s0 = inlined_call_operand.vmem [shape: f32[16,32], index: 0, kind: input, shape index: {}]
  %s1 = inlined_call_operand.vmem [shape: f32[2,16,4], index: 1, kind: input, shape index: {}]
  %s2 = inlined_call_operand.vmem [shape: f32[2,1,32], index: 2, kind: input, shape index: {}]
  %s3 = inlined_call_operand.vmem [shape: f32[2,16,1], index: 3, kind: input, shape index: {}]
  %s4 = inlined_call_operand.vmem [shape: f32[32,32], index: 4, kind: input, shape index: {}]
  %s5 = inlined_call_operand.vmem [shape: f32[4,32], index: 5, kind: input, shape index: {}]
  %s6 = inlined_call_operand.vmem [shape: f32[1,32], index: 6, kind: input, shape index: {}]
  %s7 = inlined_call_operand.hbm [shape: f32[2,16,32], index: 7, kind: output, shape index: {}]
  %s8 = sld [smem:[#allocation0]]
  $region61: #{tpu_custom_call.1} parent=0
    _
  %s10 = ssub.s32 1, %s8
  %s11 = scalar_select 0, %s10, %s8
  $region1: #{tpu_custom_call.1} parent=0
    #allocation2 [shape = 'u8[16384]{0}', space=vmem, size = 0x4000, scoped, tag = 'output window, operand 0']
    #allocation3 [shape = 's32[2]{0}', space=sflag, size = 0x8, scoped, tag = 'scoped memory for tpu_custom_call.1']
    %12 = vsyncpa [#allocation3], 0
    %s13 = scalar_lea.sflag [#allocation3], 1
    %14 = vsyncpa %s13, 0
    loop: start=0, step=1, limit=4
    $region2: #{tpu_custom_call.1} parent=1 // loop_pre_header
      _
    $region3: #{tpu_custom_call.1} parent=1 // loop_header
      %s16 = sphi 0, %s20
      %p17 = scmp.ge.s32.totalorder %s16, 4
      %s23 = sphi 0, %s35
      %s24 = sphi 0, %s31
      %s25 = sphi 0, %s23
      %s26 = sphi 0, %s24
      %s27 = sphi 0, %s25
      %s28 = sphi 0, %s26
      %s38 = sphi 0, %s40
      %s41 = sphi 0, %s38
      %s42 = sphi 0, %s41
      %s58 = sphi 0, %s42
      %s66 = sphi 0, %s68
      %s69 = sphi 0, %s66
      %s70 = sphi 0, %s69
      %s86 = sphi 0, %s70
      %s92 = sphi 0, %s94
      %s95 = sphi 0, %s92
      %s96 = sphi 0, %s95
      %s112 = sphi 0, %s96
      %s120 = sphi 0, %s122
      %s123 = sphi 0, %s120
      %s124 = sphi 0, %s123
      %s140 = sphi 0, %s124
      %s144 = sphi 0, %s144
      %s146 = sphi 0, %s144
      %s147 = sphi 0, %s146
      %s161 = sphi 0, %s147
      %s165 = sphi 0, %s165
      %s167 = sphi 0, %s165
      %s168 = sphi 0, %s167
      %s182 = sphi 0, %s168
      %s186 = sphi 0, %s186
      %s188 = sphi 0, %s186
      %s189 = sphi 0, %s188
      %s203 = sphi 0, %s189
      %s211 = sphi 0, %s213
      %s214 = sphi 0, %s211
      %s215 = sphi 0, %s214
      %s231 = sphi 0, %s215
    $region4: #{tpu_custom_call.1} parent=1 // loop_header_branch
      %19 = sbr.rel (%p17) target = $region8
    $region5: #{tpu_custom_call.1} parent=1 // loop_body
      %s21 = ssub.s32 %s16, 1
      %s22 = ssub.s32 %s16, 2
      %s29 = sadd.s32 1, %s24
      %p30 = scmp.ge.s32.totalorder %s29, 2
      %s31 = scalar_select %p30, 0, %s29
      %s32 = sadd.s32 1, %s23
      %s33 = scalar_select %p30, %s32, %s23
      %p34 = scmp.ge.s32.totalorder %s33, 1
      %s35 = scalar_select %p34, 0, %s33
      %s36 = ssub.s32 %s23, %s35
      %p37 = scmp.eq.s32.totalorder %s36, 0
      %s39 = sadd.s32 %s38, 1
      %s40 = scalar_select %p37, %s38, %s39
      %p43 = pneg %p37
      %p44 = scmp.eq.s32.totalorder %s16, 1
      %p45 = por %p43, %p44
      %p46 = scmp.ne.s32.totalorder %s38, %s41
      %p47 = scmp.eq.s32.totalorder %s16, 0
      %p48 = por %p46, %p47
      %p49 = scmp.ne.s32.totalorder %s38, %s41
      %p50 = scmp.eq.s32.totalorder %s21, 1
      %p51 = por %p49, %p50
      %p52 = scmp.ne.s32.totalorder %s41, %s42
      %p53 = scmp.eq.s32.totalorder %s21, 0
      %p54 = por %p52, %p53
      %p55 = scmp.ne.s32.totalorder %s41, %s42
      %p56 = scmp.eq.s32.totalorder %s22, 1
      %p57 = por %p55, %p56
      %p59 = scmp.ne.s32.totalorder %s42, %s58
      %p60 = scmp.eq.s32.totalorder %s22, 0
      %p61 = por %p59, %p60
      %s62 = ssub.s32 %s24, %s31
      %s63 = ssub.s32 %s23, %s35
      %s64 = sor.u32 %s62, %s63
      %p65 = scmp.eq.s32.totalorder %s64, 0
      %s67 = sadd.s32 %s66, 1
      %s68 = scalar_select %p65, %s66, %s67
      %p71 = pneg %p65
      %p72 = scmp.eq.s32.totalorder %s16, 1
      %p73 = por %p71, %p72
      %p74 = scmp.ne.s32.totalorder %s66, %s69
      %p75 = scmp.eq.s32.totalorder %s16, 0
      %p76 = por %p74, %p75
      %p77 = scmp.ne.s32.totalorder %s66, %s69
      %p78 = scmp.eq.s32.totalorder %s21, 1
      %p79 = por %p77, %p78
      %p80 = scmp.ne.s32.totalorder %s69, %s70
      %p81 = scmp.eq.s32.totalorder %s21, 0
      %p82 = por %p80, %p81
      %p83 = scmp.ne.s32.totalorder %s69, %s70
      %p84 = scmp.eq.s32.totalorder %s22, 1
      %p85 = por %p83, %p84
      %p87 = scmp.ne.s32.totalorder %s70, %s86
      %p88 = scmp.eq.s32.totalorder %s22, 0
      %p89 = por %p87, %p88
      %s90 = ssub.s32 %s24, %s31
      %p91 = scmp.eq.s32.totalorder %s90, 0
      %s93 = sadd.s32 %s92, 1
      %s94 = scalar_select %p91, %s92, %s93
      %p97 = pneg %p91
      %p98 = scmp.eq.s32.totalorder %s16, 1
      %p99 = por %p97, %p98
      %p100 = scmp.ne.s32.totalorder %s92, %s95
      %p101 = scmp.eq.s32.totalorder %s16, 0
      %p102 = por %p100, %p101
      %p103 = scmp.ne.s32.totalorder %s92, %s95
      %p104 = scmp.eq.s32.totalorder %s21, 1
      %p105 = por %p103, %p104
      %p106 = scmp.ne.s32.totalorder %s95, %s96
      %p107 = scmp.eq.s32.totalorder %s21, 0
      %p108 = por %p106, %p107
      %p109 = scmp.ne.s32.totalorder %s95, %s96
      %p110 = scmp.eq.s32.totalorder %s22, 1
      %p111 = por %p109, %p110
      %p113 = scmp.ne.s32.totalorder %s96, %s112
      %p114 = scmp.eq.s32.totalorder %s22, 0
      %p115 = por %p113, %p114
      %s116 = ssub.s32 %s24, %s31
      %s117 = ssub.s32 %s23, %s35
      %s118 = sor.u32 %s116, %s117
      %p119 = scmp.eq.s32.totalorder %s118, 0
      %s121 = sadd.s32 %s120, 1
      %s122 = scalar_select %p119, %s120, %s121
      %p125 = pneg %p119
      %p126 = scmp.eq.s32.totalorder %s16, 1
      %p127 = por %p125, %p126
      %p128 = scmp.ne.s32.totalorder %s120, %s123
      %p129 = scmp.eq.s32.totalorder %s16, 0
      %p130 = por %p128, %p129
      %p131 = scmp.ne.s32.totalorder %s120, %s123
      %p132 = scmp.eq.s32.totalorder %s21, 1
      %p133 = por %p131, %p132
      %p134 = scmp.ne.s32.totalorder %s123, %s124
      %p135 = scmp.eq.s32.totalorder %s21, 0
      %p136 = por %p134, %p135
      %p137 = scmp.ne.s32.totalorder %s123, %s124
      %p138 = scmp.eq.s32.totalorder %s22, 1
      %p139 = por %p137, %p138
      %p141 = scmp.ne.s32.totalorder %s124, %s140
      %p142 = scmp.eq.s32.totalorder %s22, 0
      %p143 = por %p141, %p142
      %s145 = sadd.s32 %s144, 1
      %p148 = scmp.eq.s32.totalorder %s16, 1
      %p149 = scmp.ne.s32.totalorder %s144, %s146
      %p150 = scmp.eq.s32.totalorder %s16, 0
      %p151 = por %p149, %p150
      %p152 = scmp.ne.s32.totalorder %s144, %s146
      %p153 = scmp.eq.s32.totalorder %s21, 1
      %p154 = por %p152, %p153
      %p155 = scmp.ne.s32.totalorder %s146, %s147
      %p156 = scmp.eq.s32.totalorder %s21, 0
      %p157 = por %p155, %p156
      %p158 = scmp.ne.s32.totalorder %s146, %s147
      %p159 = scmp.eq.s32.totalorder %s22, 1
      %p160 = por %p158, %p159
      %p162 = scmp.ne.s32.totalorder %s147, %s161
      %p163 = scmp.eq.s32.totalorder %s22, 0
      %p164 = por %p162, %p163
      %s166 = sadd.s32 %s165, 1
      %p169 = scmp.eq.s32.totalorder %s16, 1
      %p170 = scmp.ne.s32.totalorder %s165, %s167
      %p171 = scmp.eq.s32.totalorder %s16, 0
      %p172 = por %p170, %p171
      %p173 = scmp.ne.s32.totalorder %s165, %s167
      %p174 = scmp.eq.s32.totalorder %s21, 1
      %p175 = por %p173, %p174
      %p176 = scmp.ne.s32.totalorder %s167, %s168
      %p177 = scmp.eq.s32.totalorder %s21, 0
      %p178 = por %p176, %p177
      %p179 = scmp.ne.s32.totalorder %s167, %s168
      %p180 = scmp.eq.s32.totalorder %s22, 1
      %p181 = por %p179, %p180
      %p183 = scmp.ne.s32.totalorder %s168, %s182
      %p184 = scmp.eq.s32.totalorder %s22, 0
      %p185 = por %p183, %p184
      %s187 = sadd.s32 %s186, 1
      %p190 = scmp.eq.s32.totalorder %s16, 1
      %p191 = scmp.ne.s32.totalorder %s186, %s188
      %p192 = scmp.eq.s32.totalorder %s16, 0
      %p193 = por %p191, %p192
      %p194 = scmp.ne.s32.totalorder %s186, %s188
      %p195 = scmp.eq.s32.totalorder %s21, 1
      %p196 = por %p194, %p195
      %p197 = scmp.ne.s32.totalorder %s188, %s189
      %p198 = scmp.eq.s32.totalorder %s21, 0
      %p199 = por %p197, %p198
      %p200 = scmp.ne.s32.totalorder %s188, %s189
      %p201 = scmp.eq.s32.totalorder %s22, 1
      %p202 = por %p200, %p201
      %p204 = scmp.ne.s32.totalorder %s189, %s203
      %p205 = scmp.eq.s32.totalorder %s22, 0
      %p206 = por %p204, %p205
      %s207 = ssub.s32 %s24, %s31
      %s208 = ssub.s32 %s23, %s35
      %s209 = sor.u32 %s207, %s208
      %p210 = scmp.eq.s32.totalorder %s209, 0
      %s212 = sadd.s32 %s211, 1
      %s213 = scalar_select %p210, %s211, %s212
      %p216 = pneg %p210
      %p217 = scmp.eq.s32.totalorder %s16, 1
      %p218 = por %p216, %p217
      %p219 = scmp.ne.s32.totalorder %s211, %s214
      %p220 = scmp.eq.s32.totalorder %s16, 0
      %p221 = por %p219, %p220
      %p222 = scmp.ne.s32.totalorder %s211, %s214
      %p223 = scmp.eq.s32.totalorder %s21, 1
      %p224 = por %p222, %p223
      %p225 = scmp.ne.s32.totalorder %s214, %s215
      %p226 = scmp.eq.s32.totalorder %s21, 0
      %p227 = por %p225, %p226
      %p228 = scmp.ne.s32.totalorder %s214, %s215
      %p229 = scmp.eq.s32.totalorder %s22, 1
      %p230 = por %p228, %p229
      %p232 = scmp.ne.s32.totalorder %s215, %s231
      %p233 = scmp.eq.s32.totalorder %s22, 0
      %p234 = por %p232, %p233
      %p235 = scmp.le.s32.totalorder 1, %s16
      %p236 = scmp.lt.s32.totalorder %s16, 3
      %p237 = pnand %p235, %p236
      %p238 = pneg %p237
      // Predicated region
      $region9: #{tpu_custom_call.1} parent=5 // pred_check
        _
      $region10: #{tpu_custom_call.1} parent=5 // pred_check_branch
        %240 = sbr.rel (%p237) target = $region12
      $region11: #{tpu_custom_call.1} parent=5 // pred_region
        %s241 = ssub.s32 %s16, 1
        // Predicated region
        $region13: #{tpu_custom_call.1} parent=11 // pred_check
          %p242 = pneg %p54
        $region14: #{tpu_custom_call.1} parent=11 // pred_check_branch
          %244 = sbr.rel (%p242) target = $region16
        $region15: #{tpu_custom_call.1} parent=11 // pred_region
          %s245 = smul.u32 2, %s25
          %p246 = scmp.lt.s32.totalorder %s245, 1
          %s247 = scalar_select %p246, %s245, 1
          %s248 = smul.addr %s247, 8
          %s249 = scalar_lea.vmem %s0, %s248
          %s250 = smul.u32 2, %s25
        $region16: #{tpu_custom_call.1} parent=11 // pred_fallthru
          _
        // Predicated region
        $region17: #{tpu_custom_call.1} parent=11 // pred_check
          %p251 = pneg %p157
        $region18: #{tpu_custom_call.1} parent=11 // pred_check_branch
          %253 = sbr.rel (%p251) target = $region20
        $region19: #{tpu_custom_call.1} parent=11 // pred_region
          _
        $region20: #{tpu_custom_call.1} parent=11 // pred_fallthru
          _
        // Predicated region
        $region21: #{tpu_custom_call.1} parent=11 // pred_check
          %p254 = pneg %p178
        $region22: #{tpu_custom_call.1} parent=11 // pred_check_branch
          %256 = sbr.rel (%p254) target = $region24
        $region23: #{tpu_custom_call.1} parent=11 // pred_region
          _
        $region24: #{tpu_custom_call.1} parent=11 // pred_fallthru
          _
        // Predicated region
        $region25: #{tpu_custom_call.1} parent=11 // pred_check
          %p257 = pneg %p199
        $region26: #{tpu_custom_call.1} parent=11 // pred_check_branch
          %259 = sbr.rel (%p257) target = $region28
        $region27: #{tpu_custom_call.1} parent=11 // pred_region
          _
        $region28: #{tpu_custom_call.1} parent=11 // pred_fallthru
          _
      $region12: #{tpu_custom_call.1} parent=5 // pred_fallthru
        _
      %p260 = scmp.lt.s32.totalorder %s16, 2
      // Predicated region
      $region29: #{tpu_custom_call.1} parent=5 // pred_check
        %p261 = pneg %p260
      $region30: #{tpu_custom_call.1} parent=5 // pred_check_branch
        %263 = sbr.rel (%p261) target = $region32
      $region31: #{tpu_custom_call.1} parent=5 // pred_region
        // Predicated region
        $region33: #{tpu_custom_call.1} parent=31 // pred_check
          %p264 = pneg %p76
        $region34: #{tpu_custom_call.1} parent=31 // pred_check_branch
          %266 = sbr.rel (%p264) target = $region36
        $region35: #{tpu_custom_call.1} parent=31 // pred_region
          %s267 = smul.u32 2, %s23
          %p268 = scmp.lt.s32.totalorder %s24, 1
          %s269 = scalar_select %p268, %s24, 1
          %p270 = scmp.lt.s32.totalorder %s267, 1
          %s271 = scalar_select %p270, %s267, 1
          %s272 = smul.addr %s269, 2
          %s273 = sadd.s32 %s271, %s272
          %s274 = smul.addr %s273, 8
          %s275 = scalar_lea.vmem %s1, %s274
          %s276 = smul.u32 2, %s23
        $region36: #{tpu_custom_call.1} parent=31 // pred_fallthru
          _
        // Predicated region
        $region37: #{tpu_custom_call.1} parent=31 // pred_check
          %p277 = pneg %p102
        $region38: #{tpu_custom_call.1} parent=31 // pred_check_branch
          %279 = sbr.rel (%p277) target = $region40
        $region39: #{tpu_custom_call.1} parent=31 // pred_region
          %p280 = scmp.lt.s32.totalorder %s24, 1
          %s281 = scalar_select %p280, %s24, 1
          %s282 = scalar_lea.vmem %s2, %s281
        $region40: #{tpu_custom_call.1} parent=31 // pred_fallthru
          _
        // Predicated region
        $region41: #{tpu_custom_call.1} parent=31 // pred_check
          %p283 = pneg %p130
        $region42: #{tpu_custom_call.1} parent=31 // pred_check_branch
          %285 = sbr.rel (%p283) target = $region44
        $region43: #{tpu_custom_call.1} parent=31 // pred_region
          %s286 = smul.u32 2, %s23
          %p287 = scmp.lt.s32.totalorder %s24, 1
          %s288 = scalar_select %p287, %s24, 1
          %p289 = scmp.lt.s32.totalorder %s286, 1
          %s290 = scalar_select %p289, %s286, 1
          %s291 = smul.addr %s288, 2
          %s292 = sadd.s32 %s290, %s291
          %s293 = smul.addr %s292, 8
          %s294 = scalar_lea.vmem %s3, %s293
          %s295 = smul.u32 2, %s23
        $region44: #{tpu_custom_call.1} parent=31 // pred_fallthru
          _
      $region32: #{tpu_custom_call.1} parent=5 // pred_fallthru
        _
      %p296 = scmp.le.s32.totalorder 1, %s16
      %p297 = scmp.lt.s32.totalorder %s16, 3
      %p298 = pnand %p296, %p297
      %p299 = pneg %p298
      // Predicated region
      $region45: #{tpu_custom_call.1} parent=5 // pred_check
        _
      $region46: #{tpu_custom_call.1} parent=5 // pred_check_branch
        %301 = sbr.rel (%p298) target = $region48
      $region47: #{tpu_custom_call.1} parent=5 // pred_region
        %s302 = ssub.s32 %s16, 1
        %s303 = smul.u32 2, %s25
        %p304 = scmp.lt.s32.totalorder %s303, 1
        %s305 = scalar_select %p304, %s303, 1
        %s306 = smul.addr %s305, 8
        %s307 = scalar_lea.vmem %s0, %s306
        %p308 = pneg %p54
        %p309 = pneg %p51
        %s310 = smul.u32 2, %s25
        %p311 = scmp.lt.s32.totalorder %s26, 1
        %s312 = scalar_select %p311, %s26, 1
        %p313 = scmp.lt.s32.totalorder %s310, 1
        %s314 = scalar_select %p313, %s310, 1
        %s315 = smul.addr %s312, 2
        %s316 = sadd.s32 %s314, %s315
        %s317 = smul.addr %s316, 8
        %s318 = scalar_lea.vmem %s1, %s317
        %p319 = pneg %p82
        %p320 = pneg %p79
        %p321 = scmp.lt.s32.totalorder %s26, 1
        %s322 = scalar_select %p321, %s26, 1
        %s323 = scalar_lea.vmem %s2, %s322
        %p324 = pneg %p108
        %p325 = pneg %p105
        %s326 = smul.u32 2, %s25
        %p327 = scmp.lt.s32.totalorder %s26, 1
        %s328 = scalar_select %p327, %s26, 1
        %p329 = scmp.lt.s32.totalorder %s326, 1
        %s330 = scalar_select %p329, %s326, 1
        %s331 = smul.addr %s328, 2
        %s332 = sadd.s32 %s330, %s331
        %s333 = smul.addr %s332, 8
        %s334 = scalar_lea.vmem %s3, %s333
        %p335 = pneg %p136
        %p336 = pneg %p133
        %p337 = pneg %p157
        %p338 = pneg %p154
        %p339 = pneg %p178
        %p340 = pneg %p175
        %p341 = pneg %p199
        %p342 = pneg %p196
        %p343 = pneg %p227
        %p344 = pneg %p224
        %s345 = sand.u32 %s214, 1
        %s346 = scalar_lea.sflag [#allocation3], %s345
        %s347 = sand.u32 %s214, 1
        %s348 = smul.addr %s347, 16
        %s349 = scalar_lea.vmem [#allocation2], %s348
        %s350 = smul.u32 2, %s25
        %p351 = scmp.lt.s32.totalorder %s350, 1
        %s352 = scalar_select %p351, %s350, 1
        %s353 = smul.addr %s352, 8
        %s354 = scalar_lea.vmem %s0, %s353
        %s355 = smul.u32 2, %s25
        %s356 = smul.u32 2, %s25
        %p357 = scmp.lt.s32.totalorder %s26, 1
        %s358 = scalar_select %p357, %s26, 1
        %p359 = scmp.lt.s32.totalorder %s356, 1
        %s360 = scalar_select %p359, %s356, 1
        %s361 = smul.addr %s358, 2
        %s362 = sadd.s32 %s360, %s361
        %s363 = smul.addr %s362, 8
        %s364 = scalar_lea.vmem %s1, %s363
        %s365 = smul.u32 2, %s25
        %p366 = scmp.lt.s32.totalorder %s26, 1
        %s367 = scalar_select %p366, %s26, 1
        %s368 = scalar_lea.vmem %s2, %s367
        %s369 = smul.u32 2, %s25
        %p370 = scmp.lt.s32.totalorder %s26, 1
        %s371 = scalar_select %p370, %s26, 1
        %p372 = scmp.lt.s32.totalorder %s369, 1
        %s373 = scalar_select %p372, %s369, 1
        %s374 = smul.addr %s371, 2
        %s375 = sadd.s32 %s373, %s374
        %s376 = smul.addr %s375, 8
        %s377 = scalar_lea.vmem %s3, %s376
        %s378 = smul.u32 2, %s25
        %s379 = smul.u32 2, %s25
        %v380 = vld [vmem:[%s354] sm:$0xff]
        %v381 = vld [vmem:[%s354 + $0x8] sm:$0xff]
        %v382 = vld [vmem:[%s4] sm:$0xff]
        %v383 = vld [vmem:[%s4 + $0x8] sm:$0xff]
        %v384 = vld [vmem:[%s4 + $0x10] sm:$0xff]
        %v385 = vld [vmem:[%s4 + $0x18] sm:$0xff]
        %v386 = vld [vmem:[%s364] sm:$0xff]
        %v387 = vld [vmem:[%s364 + $0x8] sm:$0xff]
        %v388 = vld [vmem:[%s5] sm:$0xf]
        %vm389 = vcmask 31744
        %v391 = vsel %vm389, %v386, 0
        %v394 = vsel %vm389, %v387, 0
        %vm396 = vcmask 1043456
        %v398 = vsel %vm396, %v388, 0
        %400 = vmatprep.subr.mxu0 0.0
        %401 = vmatpush1.msra.mxu0 %v398
        %402 = vmatprep.subr.mxu0 0.0
        %403 = vmatpush1.msra.mxu0 0.0
        %404 = vmatprep.subr.mxu0 0.0
        %405 = vmatpush1.msra.mxu0 0.0
        %406 = vmatprep.subr.mxu0 0.0
        %407 = vmatpush1.msra.mxu0 0.0
        %408 = vmatprep.subr.mxu0 0.0
        %409 = vmatpush1.msra.mxu0 0.0
        %410 = vmatprep.subr.mxu0 0.0
        %411 = vmatpush1.msra.mxu0 0.0
        %412 = vmatprep.subr.mxu0 0.0
        %413 = vmatpush1.msra.mxu0 0.0
        %414 = vmatprep.subr.mxu0 0.0
        %415 = vmatpush1.msra.mxu0 0.0
        %416 = vmatprep.subr.mxu0 0.0
        %417 = vmatpush1.msra.mxu0 0.0
        %418 = vmatprep.subr.mxu0 0.0
        %419 = vmatpush1.msra.mxu0 0.0
        %420 = vmatprep.subr.mxu0 0.0
        %421 = vmatpush1.msra.mxu0 0.0
        %422 = vmatprep.subr.mxu0 0.0
        %423 = vmatpush1.msra.mxu0 0.0
        %424 = vmatprep.subr.mxu0 0.0
        %425 = vmatpush1.msra.mxu0 0.0
        %426 = vmatprep.subr.mxu0 0.0
        %427 = vmatpush1.msra.mxu0 0.0
        %428 = vmatprep.subr.mxu0 0.0
        %429 = vmatpush1.msra.mxu0 0.0
        %430 = vmatprep.subr.mxu0 0.0
        %431 = vmatpush1.msra.mxu0 0.0
        %432 = vmatprep.subr.mxu0 0.0
        %433 = vmatpush1.msra.mxu0 0.0
        %434 = vmatprep.subr.mxu0 0.0
        %435 = vmatpush1.msra.mxu0 0.0
        %436 = vmatprep.subr.mxu0 0.0
        %437 = vmatpush1.msra.mxu0 0.0
        %438 = vmatprep.subr.mxu0 0.0
        %439 = vmatpush1.msra.mxu0 0.0
        %440 = vmatprep.subr.mxu0 0.0
        %441 = vmatpush1.msra.mxu0 0.0
        %442 = vmatprep.subr.mxu0 0.0
        %443 = vmatpush1.msra.mxu0 0.0
        %444 = vmatprep.subr.mxu0 0.0
        %445 = vmatpush1.msra.mxu0 0.0
        %446 = vmatprep.subr.mxu0 0.0
        %447 = vmatpush1.msra.mxu0 0.0
        %448 = vmatprep.subr.mxu0 0.0
        %449 = vmatpush1.msra.mxu0 0.0
        %450 = vmatprep.subr.mxu0 0.0
        %451 = vmatpush1.msra.mxu0 0.0
        %452 = vmatprep.subr.mxu0 0.0
        %453 = vmatpush1.msra.mxu0 0.0
        %454 = vmatprep.subr.mxu0 0.0
        %455 = vmatpush1.msra.mxu0 0.0
        %456 = vmatprep.subr.mxu0 0.0
        %457 = vmatpush1.msra.mxu0 0.0
        %458 = vmatprep.subr.mxu0 0.0
        %459 = vmatpush1.msra.mxu0 0.0
        %460 = vmatprep.subr.mxu0 0.0
        %461 = vmatpush1.msra.mxu0 0.0
        %462 = vmatprep.subr.mxu0 0.0
        %463 = vmatpush1.msra.mxu0 0.0
        %464 = vmatprep.mubr.f32.mxu0 0.0
        %465 = vmatmul.mubr.f32.gmra.mrb[0].mxu0 %v391
        %v466 = vpop.f32.mrb[0].mxu0
        %v467 = vadd.f32 0.0, %v466
        %v468 = vpop.f32.mrb[0].mxu0
        %469 = vmatprep.mubr.f32.mxu0 0.0
        %470 = vmatmul.mubr.f32.gmra.mrb[0].mxu0 %v394
        %v471 = vpop.f32.mrb[0].mxu0
        %v472 = vadd.f32 0.0, %v471
        %v473 = vpop.f32.mrb[0].mxu0
        %474 = vdwg.mxu0
        %vm475 = vcmask 261120
        %v477 = vsel %vm475, %v380, 0
        %v480 = vsel %vm475, %v381, 0
        %482 = vmatprep.subr.mxu0 0.0
        %483 = vmatpush1.msra.mxu0 %v382
        %484 = vmatprep.subr.mxu0 0.0
        %485 = vmatpush1.msra.mxu0 %v383
        %486 = vmatprep.subr.mxu0 0.0
        %487 = vmatpush1.msra.mxu0 %v384
        %488 = vmatprep.subr.mxu0 0.0
        %489 = vmatpush1.msra.mxu0 %v385
        %490 = vmatprep.subr.mxu0 0.0
        %491 = vmatpush1.msra.mxu0 0.0
        %492 = vmatprep.subr.mxu0 0.0
        %493 = vmatpush1.msra.mxu0 0.0
        %494 = vmatprep.subr.mxu0 0.0
        %495 = vmatpush1.msra.mxu0 0.0
        %496 = vmatprep.subr.mxu0 0.0
        %497 = vmatpush1.msra.mxu0 0.0
        %498 = vmatprep.subr.mxu0 0.0
        %499 = vmatpush1.msra.mxu0 0.0
        %500 = vmatprep.subr.mxu0 0.0
        %501 = vmatpush1.msra.mxu0 0.0
        %502 = vmatprep.subr.mxu0 0.0
        %503 = vmatpush1.msra.mxu0 0.0
        %504 = vmatprep.subr.mxu0 0.0
        %505 = vmatpush1.msra.mxu0 0.0
        %506 = vmatprep.subr.mxu0 0.0
        %507 = vmatpush1.msra.mxu0 0.0
        %508 = vmatprep.subr.mxu0 0.0
        %509 = vmatpush1.msra.mxu0 0.0
        %510 = vmatprep.subr.mxu0 0.0
        %511 = vmatpush1.msra.mxu0 0.0
        %512 = vmatprep.subr.mxu0 0.0
        %513 = vmatpush1.msra.mxu0 0.0
        %514 = vmatprep.subr.mxu0 0.0
        %515 = vmatpush1.msra.mxu0 0.0
        %516 = vmatprep.subr.mxu0 0.0
        %517 = vmatpush1.msra.mxu0 0.0
        %518 = vmatprep.subr.mxu0 0.0
        %519 = vmatpush1.msra.mxu0 0.0
        %520 = vmatprep.subr.mxu0 0.0
        %521 = vmatpush1.msra.mxu0 0.0
        %522 = vmatprep.subr.mxu0 0.0
        %523 = vmatpush1.msra.mxu0 0.0
        %524 = vmatprep.subr.mxu0 0.0
        %525 = vmatpush1.msra.mxu0 0.0
        %526 = vmatprep.subr.mxu0 0.0
        %527 = vmatpush1.msra.mxu0 0.0
        %528 = vmatprep.subr.mxu0 0.0
        %529 = vmatpush1.msra.mxu0 0.0
        %530 = vmatprep.subr.mxu0 0.0
        %531 = vmatpush1.msra.mxu0 0.0
        %532 = vmatprep.subr.mxu0 0.0
        %533 = vmatpush1.msra.mxu0 0.0
        %534 = vmatprep.subr.mxu0 0.0
        %535 = vmatpush1.msra.mxu0 0.0
        %536 = vmatprep.subr.mxu0 0.0
        %537 = vmatpush1.msra.mxu0 0.0
        %538 = vmatprep.subr.mxu0 0.0
        %539 = vmatpush1.msra.mxu0 0.0
        %540 = vmatprep.subr.mxu0 0.0
        %541 = vmatpush1.msra.mxu0 0.0
        %542 = vmatprep.subr.mxu0 0.0
        %543 = vmatpush1.msra.mxu0 0.0
        %544 = vmatprep.subr.mxu0 0.0
        %545 = vmatpush1.msra.mxu0 0.0
        %546 = vmatprep.mubr.f32.mxu0 0.0
        %547 = vmatmul.mubr.f32.gmra.mrb[0].mxu0 %v477
        %v548 = vpop.f32.mrb[0].mxu0
        %v549 = vadd.f32 %v467, %v548
        %v550 = vpop.f32.mrb[0].mxu0
        %551 = vmatprep.mubr.f32.mxu0 0.0
        %552 = vmatmul.mubr.f32.gmra.mrb[0].mxu0 %v480
        %v553 = vpop.f32.mrb[0].mxu0
        %v554 = vadd.f32 %v472, %v553
        %v555 = vpop.f32.mrb[0].mxu0
        %556 = vdwg.mxu0
        %v557 = vld [vmem:[%s368] sm:$0x1]
        %v559 = vlaneseq
        %v560 = vshrl.u32 %v559, 7
        %v561 = vsub.s32 0, %v560
        %v562 = vrot.slane %v557, %v561
        %v564 = vadd.f32 %v549, %v562
        %v565 = vadd.f32 %v554, %v562
        %v566 = vld [vmem:[%s377] sm:$0xff]
        %v567 = vld [vmem:[%s377 + $0x8] sm:$0xff]
        %569 = vset.pattern.permute.xlu0 0
        %570 = vperm.xlu0 %569, %v566
        %v571 = vpop.permute.xlu0 %570
        %574 = vset.pattern.permute.xlu0 0
        %575 = vperm.xlu0 %574, %v567
        %v576 = vpop.permute.xlu0 %575
        %v578 = vmul.f32 %v571, %v564
        %v579 = vmul.f32 %v576, %v565
        %v580 = vld [vmem:[%s6] sm:$0x1]
        %v582 = vlaneseq
        %v583 = vshrl.u32 %v582, 7
        %v584 = vsub.s32 0, %v583
        %v585 = vrot.slane %v580, %v584
        %v587 = vadd.f32 %v578, %v585
        %v588 = vadd.f32 %v579, %v585
        %589 = vst.msk [vmem:[%s349] sm:$0xff] %vm475, %v587
        %590 = vst.msk [vmem:[%s349 + $0x8] sm:$0xff] %vm475, %v588
        %s591 = sand.u32 %s214, 1
        %s592 = scalar_lea.sflag [#allocation3], %s591
        %s593 = sand.u32 %s214, 1
        %s594 = smul.addr %s593, 16
        %s595 = scalar_lea.vmem [#allocation2], %s594
        // Predicated region
        $region49: #{tpu_custom_call.1} parent=47 // pred_check
          %p596 = pneg %p224
        $region50: #{tpu_custom_call.1} parent=47 // pred_check_branch
          %598 = sbr.rel (%p596) target = $region52
        $region51: #{tpu_custom_call.1} parent=47 // pred_region
          %s599 = smul.u32 2, %s25
          %s601 = ssub.s32 256, 256
          %602 = vsyncadd %s592, %s601
          %s603 = smul.addr %s26, 2
          %s604 = sadd.s32 %s599, %s603
          %s605 = smul.addr %s604, 128
          %s606 = scalar_lea.hbm %s7, %s605
          %s607 = sshll.u32 %s595, 4
          %s608 = int_to_ptr.vmem [resolvable:$true] %s607
          %613 = dma.vmem_to_hbm [thread:$0]  %s608, 256, %s606, %s592, 128, 128, 8
        $region52: #{tpu_custom_call.1} parent=47 // pred_fallthru
          _
      $region48: #{tpu_custom_call.1} parent=5 // pred_fallthru
        _
      %p614 = scmp.le.s32.totalorder 2, %s16
      // Predicated region
      $region53: #{tpu_custom_call.1} parent=5 // pred_check
        %p615 = pneg %p614
      $region54: #{tpu_custom_call.1} parent=5 // pred_check_branch
        %617 = sbr.rel (%p615) target = $region56
      $region55: #{tpu_custom_call.1} parent=5 // pred_region
        %s618 = ssub.s32 %s16, 2
        // Predicated region
        $region57: #{tpu_custom_call.1} parent=55 // pred_check
          %p619 = pneg %p230
        $region58: #{tpu_custom_call.1} parent=55 // pred_check_branch
          %621 = sbr.rel (%p619) target = $region60
        $region59: #{tpu_custom_call.1} parent=55 // pred_region
          %s622 = sand.u32 %s215, 1
          %s623 = scalar_lea.sflag [#allocation3], %s622
          %s624 = sand.u32 %s215, 1
          %s625 = smul.addr %s624, 16
          %s626 = scalar_lea.vmem [#allocation2], %s625
          %627 = dma.done %s623, 256
        $region60: #{tpu_custom_call.1} parent=55 // pred_fallthru
          _
      $region56: #{tpu_custom_call.1} parent=5 // pred_fallthru
        _
    $region6: #{tpu_custom_call.1} parent=1 // loop_footer
      %s20 = sadd.s32 1, %s16
    $region7: #{tpu_custom_call.1} parent=1 // loop_footer_branch
      %15 = sbr.rel target = $region3
    $region8: #{tpu_custom_call.1} parent=1 // loop_exit
      _
    %628 = vsyncpa [#allocation3], 1
    %s629 = scalar_lea.sflag [#allocation3], 1
    %630 = vsyncpa %s629, 1

</llo_original>
